<compile_context>
chip_gen: v7x
topology: tpu7x:2x2x1
jax: 0.10.0
libtpu: 0.0.40
codegen_flags: <defaults>
</compile_context>

<pallas_src>
import functools

import jax
import jax.numpy as jnp
from jax.experimental import pallas as pl
from jax.experimental.pallas import tpu as pltpu

_TARGET_BLOCK_BYTES = 2 * 1024 * 1024   # ~2 MiB per input block
_MAX_BLOCK_ROWS = 4096


def _apply_activation(x, activation):
    if activation == "sigmoid":
        return jax.nn.sigmoid(x)
    if activation == "gelu":
        # torch.nn.GELU default is exact erf, not the tanh approximation.
        return jax.nn.gelu(x, approximate=False)
    if activation == "silu":
        return jax.nn.silu(x)
    if activation == "relu":
        return jnp.maximum(x, jnp.zeros_like(x))
    raise ValueError(f"unknown activation: {activation}")


def _glu_split_kernel(x1_ref, x2_ref, o_ref, *, activation, compute_dtype):
    """Fast path: x1 / x2 arrive as separate, lane-aligned VMEM tiles."""
    x1 = x1_ref[...].astype(compute_dtype)
    x2 = x2_ref[...].astype(compute_dtype)
    o_ref[...] = (x1 * _apply_activation(x2, activation)).astype(o_ref.dtype)


def _glu_fused_kernel(x_ref, o_ref, *, half, activation, compute_dtype):
    """Fallback path (half not a multiple of 128): slice full-last-dim tile."""
    x = x_ref[...]
    x1 = x[:, :half].astype(compute_dtype)
    x2 = x[:, half:].astype(compute_dtype)
    o_ref[...] = (x1 * _apply_activation(x2, activation)).astype(o_ref.dtype)


def _pick_lane_tile(half, dtype_bytes):
    """Largest multiple-of-128 divisor of `half` s.t. an 8-row slab <= target."""
    if half * dtype_bytes * 8 <= _TARGET_BLOCK_BYTES:
        return half
    q = half // 128
    for d in range(q, 0, -1):
        if q % d == 0 and d * 128 * dtype_bytes * 8 <= _TARGET_BLOCK_BYTES:
            return d * 128
    return 128


def _pick_row_tile(m, bytes_per_block_row):
    """Row tile (multiple of 8 when possible) + padded row count for ragged m."""
    ideal = _TARGET_BLOCK_BYTES // max(bytes_per_block_row, 1)
    ideal = max(8, min(_MAX_BLOCK_ROWS, (ideal // 8) * 8))
    if m <= ideal:
        return m, m                       # one row-block == full extent is legal
    if m % ideal == 0:
        return ideal, m
    for cand in range(ideal, 7, -8):      # nearest multiple-of-8 divisor of m
        if m % cand == 0:
            return cand, m
    m_pad = pl.cdiv(m, ideal) * ideal     # no nice divisor: pad instead of tiny tiles
    return ideal, m_pad


def glu_pallas(x, activation="sigmoid"):
    """x1, x2 = chunk(x, 2, axis=-1);  return x1 * activation(x2)."""
    *lead, last = x.shape
    assert last % 2 == 0, "last dim must be even for GLU"
    half = last // 2

    m = 1
    for d in lead:
        m *= d
    x2d = x.reshape(m, last)

    dtype_bytes = jnp.dtype(x.dtype).itemsize
    # bf16 compute is native on v6e/v7x and halves vreg pressure; otherwise f32.
    compute_dtype = x.dtype if x.dtype == jnp.bfloat16 else jnp.float32

    lane_aligned = (half % 128 == 0)

    if lane_aligned:
        th = _pick_lane_tile(half, dtype_bytes)
        tm, m_pad = _pick_row_tile(m, th * dtype_bytes)
    else:
        # TODO(synk): when half < 128, fold rows into the lane axis (needs a
        # strided gather of the two halves) so output stores stay lane-dense.
        th = half
        tm, m_pad = _pick_row_tile(m, last * dtype_bytes)

    if m_pad != m:
        x2d = jnp.pad(x2d, ((0, m_pad - m), (0, 0)))

    n_elems = m_pad * half
    cost = pl.CostEstimate(
        flops=2 * n_elems,
        transcendentals=0 if activation == "relu" else n_elems,
        bytes_accessed=(m_pad * last + m_pad * half) * dtype_bytes,
    )

    if lane_aligned:
        n_lane_blocks = half // th
        in_block_bytes = tm * th * dtype_bytes
        needed = 2 * 3 * in_block_bytes          # double-buffered: 2 in + 1 out
        vmem_limit = int(min(max(2 * needed + (4 << 20), 32 << 20), 48 << 20))

        kernel = functools.partial(_glu_split_kernel, activation=activation,
                                   compute_dtype=compute_dtype)
        out2d = pl.pallas_call(
            kernel,
            out_shape=jax.ShapeDtypeStruct((m_pad, half), x.dtype),
            grid_spec=pltpu.PrefetchScalarGridSpec(
                num_scalar_prefetch=0,
                grid=(m_pad // tm, n_lane_blocks),
                in_specs=[
                    pl.BlockSpec((tm, th), lambda i, j: (i, j)),
                    pl.BlockSpec((tm, th), lambda i, j: (i, j + n_lane_blocks)),
                ],
                out_specs=pl.BlockSpec((tm, th), lambda i, j: (i, j)),
            ),
            compiler_params=pltpu.CompilerParams(
                dimension_semantics=("parallel", "parallel"),
                vmem_limit_bytes=vmem_limit),
            cost_estimate=cost,
        )(x2d, x2d)
    else:
        in_block_bytes = tm * last * dtype_bytes
        out_block_bytes = tm * half * dtype_bytes
        needed = 2 * (in_block_bytes + out_block_bytes)
        vmem_limit = int(min(max(2 * needed + (4 << 20), 32 << 20), 48 << 20))

        kernel = functools.partial(_glu_fused_kernel, half=half,
                                   activation=activation,
                                   compute_dtype=compute_dtype)
        out2d = pl.pallas_call(
            kernel,
            out_shape=jax.ShapeDtypeStruct((m_pad, half), x.dtype),
            grid_spec=pltpu.PrefetchScalarGridSpec(
                num_scalar_prefetch=0,
                grid=(m_pad // tm,),
                in_specs=[pl.BlockSpec((tm, last), lambda i: (i, 0))],
                out_specs=pl.BlockSpec((tm, half), lambda i: (i, 0)),
            ),
            compiler_params=pltpu.CompilerParams(
                dimension_semantics=("parallel",),
                vmem_limit_bytes=vmem_limit),
            cost_estimate=cost,
        )(x2d)

    if m_pad != m:
        out2d = out2d[:m]
    return out2d.reshape(*lead, half)


def _glu_ref(x, activation="sigmoid"):
    x1, x2 = jnp.split(x, 2, axis=-1)
    return x1 * _apply_activation(x2, activation)


if __name__ == "__main__":
    k1, k2 = jax.random.split(jax.random.PRNGKey(0))

    # Small module-shaped input (batch, seq, 2*hidden) — exercises fallback path.
    batch, seq, hidden = 2, 8, 32
    x_small = jax.random.normal(k1, (batch, seq, 2 * hidden), dtype=jnp.float32)
    out_small = jax.block_until_ready(glu_pallas(x_small, activation="sigmoid"))
    ref_small = _glu_ref(x_small, activation="sigmoid")
    assert out_small.shape == (batch, seq, hidden), out_small.shape
    assert jnp.allclose(out_small, ref_small, atol=1e-5, rtol=1e-5), "sigmoid mismatch"

    # Lane-aligned input (half % 128 == 0) — exercises the split fast path.
    x_big = jax.random.normal(k2, (4, 16, 256), dtype=jnp.float32)
    out_big = jax.block_until_ready(glu_pallas(x_big, activation="silu"))
    ref_big = _glu_ref(x_big, activation="silu")
    assert out_big.shape == (4, 16, 128), out_big.shape
    assert jnp.allclose(out_big, ref_big, atol=1e-5, rtol=1e-5), "silu mismatch"

    print("KERNEL_OK")
</pallas_src>

<mosaic_0001>
module attributes {stable_mosaic.version = 11 : i64} {
  func.func @_glu_fused_kernel(%arg0: i32, %arg1: memref<16x64xf32, #tpu.memory_space<vmem>>, %arg2: memref<16x32xf32, #tpu.memory_space<vmem>>) attributes {dimension_semantics = [#tpu.dimension_semantics<parallel>], iteration_bounds = array<i64: 1>, scalar_prefetch = 0 : i64, scratch_operands = 0 : i64, tpu.core_type = #tpu.core_type<tc>, window_params = [{transform_indices = @transform_0, window_bounds = array<i64: 16, 64>}, {transform_indices = @transform_1, window_bounds = array<i64: 16, 32>}]} {
    %c0 = arith.constant 0 : index
    %c0_0 = arith.constant 0 : index
    %0 = vector.load %arg1[%c0, %c0_0] : memref<16x64xf32, #tpu.memory_space<vmem>>, vector<16x64xf32>
    %1 = vector.extract_strided_slice %0 {offsets = [0, 0], sizes = [16, 32], strides = [1, 1]} : vector<16x64xf32> to vector<16x32xf32>
    %2 = vector.extract_strided_slice %0 {offsets = [0, 32], sizes = [16, 32], strides = [1, 1]} : vector<16x64xf32> to vector<16x32xf32>
    %3 = arith.negf %2 : vector<16x32xf32>
    %4 = math.exp %3 : vector<16x32xf32>
    %cst = arith.constant 1.000000e+00 : f32
    %5 = vector.broadcast %cst : f32 to vector<16x32xf32>
    %6 = arith.addf %5, %4 : vector<16x32xf32>
    %7 = arith.divf %5, %6 : vector<16x32xf32>
    %8 = arith.mulf %1, %7 : vector<16x32xf32>
    %c0_1 = arith.constant 0 : index
    %c0_2 = arith.constant 0 : index
    %9 = vector.load %arg2[%c0_1, %c0_2] : memref<16x32xf32, #tpu.memory_space<vmem>>, vector<16x32xf32>
    tpu.vector_store %arg2[%c0_1, %c0_2], %8 {strides = array<i32>} : memref<16x32xf32, #tpu.memory_space<vmem>>, vector<16x32xf32>,
    return
  }
  func.func @transform_0(%arg0: i32) -> (i32, i32) {
    %c0_i32 = arith.constant 0 : i32
    %c0_i32_0 = arith.constant 0 : i32
    return %arg0, %c0_i32 : i32, i32
  }
  func.func @transform_1(%arg0: i32) -> (i32, i32) {
    %c0_i32 = arith.constant 0 : i32
    %c0_i32_0 = arith.constant 0 : i32
    return %arg0, %c0_i32 : i32, i32
  }
}

</mosaic_0001>

<llo_original>
// kernel: tpu_custom_call.1
$region0: #{tpu_custom_call.1}
  #allocation0 [shape = 'u32[]', space=smem, size = 0x4, offset = 0x4, fixed_abs, tag = 'smem constant byte address 0x4 - core index']
  #allocation1 [shape = 'u32[144,128]{1,0:T(1,128)}', space=vmem, size = 0x12000, scoped, tag = 'internal scratch']
  %s0 = inlined_call_operand.hbm [shape: f32[16,64], index: 0, kind: input, shape index: {}]
  %s1 = inlined_call_operand.hbm [shape: f32[16,32], index: 1, kind: output, shape index: {}]
  %s2 = sld [smem:[#allocation0]]
  $region18: #{tpu_custom_call.1} parent=0
    _
  %s4 = ssub.s32 1, %s2
  %s5 = scalar_select 0, %s4, %s2
  $region1: #{tpu_custom_call.1} parent=0
    #allocation2 [shape = 'u8[8192]{0}', space=vmem, size = 0x2000, scoped, tag = 'input window, operand 0, single buffered']
    #allocation3 [shape = 's32[1]{0}', space=sflag, size = 0x4, scoped, tag = 'scoped memory for tpu_custom_call.1']
    #allocation4 [shape = 's32[1]{0}', space=sflag, size = 0x4, scoped, tag = 'scoped memory for tpu_custom_call.1']
    #allocation5 [shape = 'u8[8192]{0}', space=vmem, size = 0x2000, scoped, tag = 'output window, operand 0, single buffered']
    %6 = vsyncpa [#allocation3], 0
    %7 = vsyncpa [#allocation4], 0
    // Predicated region
    $region2: #{tpu_custom_call.1} parent=1 // pred_check
      _
    $region3: #{tpu_custom_call.1} parent=1 // pred_check_branch
      %9 = sbr.rel (0) target = $region5
    $region4: #{tpu_custom_call.1} parent=1 // pred_region
      %s11 = ssub.s32 256, 256
      %12 = vsyncadd [#allocation3], %s11
      %s13 = sshll.u32 [#allocation2], 4
      %s14 = int_to_ptr.vmem [resolvable:$true] %s13
      %19 = dma.hbm_to_vmem [thread:$0]  %s0, 256, %s14, [#allocation3], 128, 128, 8
    $region5: #{tpu_custom_call.1} parent=1 // pred_fallthru
      _
    // Predicated region
    $region6: #{tpu_custom_call.1} parent=1 // pred_check
      _
    $region7: #{tpu_custom_call.1} parent=1 // pred_check_branch
      %21 = sbr.rel (0) target = $region9
    $region8: #{tpu_custom_call.1} parent=1 // pred_region
      %22 = dma.done [#allocation3], 256
    $region9: #{tpu_custom_call.1} parent=1 // pred_fallthru
      _
    %v23 = vld [vmem:[#allocation2] sm:$0xff]
    %v24 = vld [vmem:[#allocation2 + $0x8] sm:$0xff]
    %v25 = vxor.u32 %v23, 2147483648
    %v26 = vxor.u32 %v24, 2147483648
    %v27 = vmul.f32 %v25, 1.442695
    %v28 = vpow.pop %v27
    %v29 = vmul.f32 %v26, 1.442695
    %v30 = vpow.pop %v29
    %v31 = vadd.f32 %v28, 1.0
    %v32 = vadd.f32 %v30, 1.0
    %v33 = vrcp.pop %v31
    %v34 = vmul.f32 1.0, %v33
    %v35 = vrcp.pop %v32
    %v36 = vmul.f32 1.0, %v35
    %39 = vrot.lane.b32.xlu0 %v34, 96
    %v40 = vpop.permute.xlu0 %39
    %41 = vrot.lane.b32.xlu0 %v36, 96
    %v42 = vpop.permute.xlu0 %41
    %v45 = vmul.f32 %v23, %v40
    %v46 = vmul.f32 %v24, %v42
    %vm47 = vcmask 261120
    %48 = vst.msk [vmem:[#allocation5] sm:$0xff] %vm47, %v45
    %49 = vst.msk [vmem:[#allocation5 + $0x8] sm:$0xff] %vm47, %v46
    // Predicated region
    $region10: #{tpu_custom_call.1} parent=1 // pred_check
      _
    $region11: #{tpu_custom_call.1} parent=1 // pred_check_branch
      %51 = sbr.rel (0) target = $region13
    $region12: #{tpu_custom_call.1} parent=1 // pred_region
      %s53 = ssub.s32 256, 256
      %54 = vsyncadd [#allocation4], %s53
      %s55 = sshll.u32 [#allocation5], 4
      %s56 = int_to_ptr.vmem [resolvable:$true] %s55
      %61 = dma.vmem_to_hbm [thread:$0]  %s56, 256, %s1, [#allocation4], 128, 128, 8
    $region13: #{tpu_custom_call.1} parent=1 // pred_fallthru
      _
    // Predicated region
    $region14: #{tpu_custom_call.1} parent=1 // pred_check
      _
    $region15: #{tpu_custom_call.1} parent=1 // pred_check_branch
      %63 = sbr.rel (0) target = $region17
    $region16: #{tpu_custom_call.1} parent=1 // pred_region
      %64 = dma.done [#allocation4], 256
    $region17: #{tpu_custom_call.1} parent=1 // pred_fallthru
      _
    %65 = vsyncpa [#allocation3], 1
    %66 = vsyncpa [#allocation4], 1

</llo_original>
